<compile_context>
chip_gen: v5e
topology: v5e:2x2
jax: 0.10.0
libtpu: 0.0.40
codegen_flags: <defaults>
</compile_context>

<pallas_src>
import jax
import jax.numpy as jnp
from jax.experimental import pallas as pl
from jax.experimental.pallas import tpu as pltpu  # noqa: F401  (TPU backend)

INPUT_SIZE = (1, 3, 4, 2)
RESHAPE_SHAPE = (1, 3, 2, 4)
MATMUL_W_SHAPE = (4, 5)

R = RESHAPE_SHAPE[0] * RESHAPE_SHAPE[1] * RESHAPE_SHAPE[2]  # 6 rows
K = RESHAPE_SHAPE[3]                                        # 4 (contraction)
N = MATMUL_W_SHAPE[1]                                       # 5 (matmul out width)
LANES = 128                                                 # one vreg lane width
X2_OFF = N                                                  # x_2 packed right after x_1


def _linear_model_kernel(x_ref, w_ref, add_ref, out_ref):
    # x_ref:   (6, 4)    flattened reshaped x
    # w_ref:   (4, 128)  lanes 0:5 = W, lanes 5:9 = I4 (copies x), rest 0
    # add_ref: (6, 128)  lanes 5:9 = add_data, rest 0
    # out_ref: (6, 128)  lanes 0:5 = x @ W, lanes 5:9 = x + add_data
    out_ref[...] = add_ref[...] + jnp.dot(
        x_ref[...], w_ref[...], preferred_element_type=jnp.float32
    )


def pack_linear_model_params(matmul_data, add_data):
    """One-time packing of the module parameters (cache these)."""
    # Weight slab: [ W | I4 | 0 ]  (4, 128).  The identity block makes the
    # same MXU pass copy x into the x_2 lanes.
    w_pack = jnp.zeros((K, LANES), jnp.float32)
    w_pack = w_pack.at[:, :N].set(matmul_data.astype(jnp.float32))
    w_pack = w_pack.at[:, X2_OFF:X2_OFF + K].set(jnp.eye(K, dtype=jnp.float32))

    # Add slab: add_data at lanes 5:9, zeros elsewhere (so it doubles as the
    # accumulator seed for the x_1 lanes).
    add_pack = jnp.zeros((R, LANES), jnp.float32)
    add_pack = add_pack.at[:, X2_OFF:X2_OFF + K].set(
        jnp.reshape(add_data.astype(jnp.float32), (R, K))
    )
    return w_pack, add_pack


def linear_model_forward(x, w_pack, add_pack):
    """x: (1,3,4,2) f32, pre-packed params -> (x_1: (1,3,2,5), x_2: (1,3,2,4))."""
    x_2d = jnp.reshape(x.astype(jnp.float32), (R, K))  # row-major, same as torch

    out = pl.pallas_call(
        _linear_model_kernel,
        out_shape=jax.ShapeDtypeStruct((R, LANES), jnp.float32),
        # Single grid point; full-array blocks (block_shape == array dims
        # satisfies the (8,128) rule).
        in_specs=[
            pl.BlockSpec((R, K), lambda: (0, 0)),
            pl.BlockSpec((K, LANES), lambda: (0, 0)),
            pl.BlockSpec((R, LANES), lambda: (0, 0)),
        ],
        out_specs=pl.BlockSpec((R, LANES), lambda: (0, 0)),
        cost_estimate=pl.CostEstimate(
            flops=2 * R * K * (N + K) + R * (N + K),
            transcendentals=0,
            bytes_accessed=4 * (R * K + K * LANES + 2 * R * LANES),
        ),
    )(x_2d, w_pack, add_pack)

    # Unpack the lane-dense slab: lanes 0:5 -> x_1, lanes 5:9 -> x_2.
    x_1 = jnp.reshape(out[:, :N], RESHAPE_SHAPE[:3] + (N,))          # (1,3,2,5)
    x_2 = jnp.reshape(out[:, X2_OFF:X2_OFF + K], RESHAPE_SHAPE)      # (1,3,2,4)
    return x_1, x_2


if __name__ == "__main__":
    key = jax.random.PRNGKey(0)
    k_x, k_w, k_add = jax.random.split(key, 3)

    # Deterministic parameter init mirroring the module's __init__:
    #   matmul_data = randn(4, 5) - 0.5 ; add_data = randn(1, 3, 2, 4)
    matmul_data = jax.random.normal(k_w, MATMUL_W_SHAPE, dtype=jnp.float32) - 0.5
    add_data = jax.random.normal(k_add, RESHAPE_SHAPE, dtype=jnp.float32)

    # Init-time packing (done once, cached); not part of the per-call forward.
    w_pack, add_pack = pack_linear_model_params(matmul_data, add_data)
    w_pack, add_pack = jax.block_until_ready((w_pack, add_pack))

    x = jax.random.normal(k_x, INPUT_SIZE, dtype=jnp.float32)

    fwd = jax.jit(linear_model_forward)
    x_1, x_2 = fwd(x, w_pack, add_pack)
    jax.block_until_ready((x_1, x_2))

    # Reference check against plain JAX.
    x_r = jnp.reshape(x, RESHAPE_SHAPE)
    ref_x1 = jnp.matmul(x_r, matmul_data)
    ref_x2 = x_r + add_data
    assert x_1.shape == (1, 3, 2, 5) and x_2.shape == (1, 3, 2, 4)
    assert jnp.allclose(x_1, ref_x1, atol=1e-5, rtol=1e-5)
    assert jnp.allclose(x_2, ref_x2, atol=1e-6, rtol=1e-6)

    print("KERNEL_OK")
</pallas_src>

<mosaic_0001>
module attributes {stable_mosaic.version = 11 : i64} {
  func.func @_linear_model_kernel(%arg0: memref<6x4xf32, #tpu.memory_space<vmem>>, %arg1: memref<4x128xf32, #tpu.memory_space<vmem>>, %arg2: memref<6x128xf32, #tpu.memory_space<vmem>>, %arg3: memref<6x128xf32, #tpu.memory_space<vmem>>) attributes {dimension_semantics = [], scalar_prefetch = 0 : i64, scratch_operands = 0 : i64, tpu.core_type = #tpu.core_type<tc>} {
    %c0 = arith.constant 0 : index
    %c0_0 = arith.constant 0 : index
    %0 = vector.load %arg2[%c0, %c0_0] : memref<6x128xf32, #tpu.memory_space<vmem>>, vector<6x128xf32>
    %c0_1 = arith.constant 0 : index
    %c0_2 = arith.constant 0 : index
    %1 = vector.load %arg0[%c0_1, %c0_2] : memref<6x4xf32, #tpu.memory_space<vmem>>, vector<6x4xf32>
    %c0_3 = arith.constant 0 : index
    %c0_4 = arith.constant 0 : index
    %2 = vector.load %arg1[%c0_3, %c0_4] : memref<4x128xf32, #tpu.memory_space<vmem>>, vector<4x128xf32>
    %cst = arith.constant dense<0.000000e+00> : vector<6x128xf32>
    %3 = tpu.matmul %1, %2, %cst {dimension_numbers = #tpu.dot_dimension_numbers<[1], [0], [0], [1], [0, 0, 1, 1], [], []>} : vector<6x4xf32>, vector<4x128xf32>, vector<6x128xf32> -> vector<6x128xf32>
    %4 = arith.addf %0, %3 : vector<6x128xf32>
    %c0_5 = arith.constant 0 : index
    %c0_6 = arith.constant 0 : index
    %5 = vector.load %arg3[%c0_5, %c0_6] : memref<6x128xf32, #tpu.memory_space<vmem>>, vector<6x128xf32>
    tpu.vector_store %arg3[%c0_5, %c0_6], %4 {strides = array<i32>} : memref<6x128xf32, #tpu.memory_space<vmem>>, vector<6x128xf32>,
    return
  }
}

</mosaic_0001>

<llo_original>
// kernel: linear_model_forward.1
$region0: #{linear_model_forward.1}
  #allocation0 [shape = 'u32[]', space=smem, size = 0x4, offset = 0x4, fixed_abs, tag = 'smem constant byte address 0x4 - core index']
  #allocation1 [shape = 'u32[72,128]{1,0:T(1,128)}', space=vmem, size = 0x9000, scoped, tag = 'internal scratch']
  %s0 = inlined_call_operand.vmem [shape: f32[6,4], index: 0, kind: input, shape index: {}]
  %s1 = inlined_call_operand.vmem [shape: f32[4,128], index: 1, kind: input, shape index: {}]
  %s2 = inlined_call_operand.vmem [shape: f32[6,128], index: 2, kind: input, shape index: {}]
  %s3 = inlined_call_operand.vmem [shape: f32[6,128], index: 3, kind: output, shape index: {}]
  %s4 = sld [smem:[#allocation0]]
  $region22: #{linear_model_forward.1} parent=0
    _
  %s6 = ssub.s32 1, %s4
  %s7 = scalar_select 0, %s6, %s4
  // Predicated region
  $region2: #{linear_model_forward.1} parent=0 // pred_check
    _
  $region3: #{linear_model_forward.1} parent=0 // pred_check_branch
    %9 = sbr.rel (0) target = $region5
  $region4: #{linear_model_forward.1} parent=0 // pred_region
    _
  $region5: #{linear_model_forward.1} parent=0 // pred_fallthru
    _
  // Predicated region
  $region6: #{linear_model_forward.1} parent=0 // pred_check
    _
  $region7: #{linear_model_forward.1} parent=0 // pred_check_branch
    %11 = sbr.rel (0) target = $region9
  $region8: #{linear_model_forward.1} parent=0 // pred_region
    _
  $region9: #{linear_model_forward.1} parent=0 // pred_fallthru
    _
  // Predicated region
  $region10: #{linear_model_forward.1} parent=0 // pred_check
    _
  $region11: #{linear_model_forward.1} parent=0 // pred_check_branch
    %13 = sbr.rel (0) target = $region13
  $region12: #{linear_model_forward.1} parent=0 // pred_region
    _
  $region13: #{linear_model_forward.1} parent=0 // pred_fallthru
    _
  %v14 = vld [vmem:[%s2] sm:$0x3f]
  %v15 = vld [vmem:[%s0] sm:$0x3f]
  %v16 = vld [vmem:[%s1] sm:$0xf]
  %vm17 = vcmask 31744
  %v19 = vsel %vm17, %v15, 0
  %vm21 = vcmask 1043456
  %v23 = vsel %vm21, %v16, 0
  %25 = vmatpush.msra.mxu0 0.0
  %26 = vmatpush.msra.mxu0 0.0
  %27 = vmatpush.msra.mxu0 0.0
  %28 = vmatpush.msra.mxu0 0.0
  %29 = vmatpush.msra.mxu0 0.0
  %30 = vmatpush.msra.mxu0 0.0
  %31 = vmatpush.msra.mxu0 0.0
  %32 = vmatpush.msra.mxu0 0.0
  %33 = vmatpush.msra.mxu0 0.0
  %34 = vmatpush.msra.mxu0 0.0
  %35 = vmatpush.msra.mxu0 0.0
  %36 = vmatpush.msra.mxu0 0.0
  %37 = vmatpush.msra.mxu0 0.0
  %38 = vmatpush.msra.mxu0 0.0
  %39 = vmatpush.msra.mxu0 0.0
  %40 = vmatpush.msra.mxu0 %v23
  %41 = vmatmul.f32.gmra.mxu0 %v19
  %v42 = vpop.f32.mrf.mxu0
  %v43 = vadd.f32 0.0, %v42
  %44 = vdwg.mxu0
  %v45 = vadd.f32 %v14, %v43
  %46 = vst [vmem:[%s3] sm:$0x3f] %v45
  // Predicated region
  $region14: #{linear_model_forward.1} parent=0 // pred_check
    _
  $region15: #{linear_model_forward.1} parent=0 // pred_check_branch
    %48 = sbr.rel (0) target = $region17
  $region16: #{linear_model_forward.1} parent=0 // pred_region
    _
  $region17: #{linear_model_forward.1} parent=0 // pred_fallthru
    _
  // Predicated region
  $region18: #{linear_model_forward.1} parent=0 // pred_check
    _
  $region19: #{linear_model_forward.1} parent=0 // pred_check_branch
    %50 = sbr.rel (0) target = $region21
  $region20: #{linear_model_forward.1} parent=0 // pred_region
    _
  $region21: #{linear_model_forward.1} parent=0 // pred_fallthru
    _

</llo_original>
